<compile_context>
chip_gen: v7x
topology: tpu7x:2x2x1
jax: 0.10.0
libtpu: 0.0.40
codegen_flags: <defaults>
</compile_context>

<pallas_src>
import functools

import jax
import jax.numpy as jnp
from jax import lax
from jax.experimental import pallas as pl
from jax.experimental.pallas import tpu as pltpu

INPUT_SIZE = 50
HIDDEN_SIZE = 128
OUTPUT_SIZE = 1
OUT_PAD = 128                       # output column padded to a full lane tile
N_FUSED = HIDDEN_SIZE + OUT_PAD     # fused output width = 256


def _sigmoid(z):
    # Stable lowering on Mosaic; exp goes to the EUP slot.
    return 1.0 / (1.0 + jnp.exp(-z))


# ----------------------------------------------------------------------------
# Single-step RNN cell kernel (matches nlp_model.forward exactly).
# Not on any hot loop; real work should go through the sequence kernel below.
# ----------------------------------------------------------------------------
def _rnn_cell_kernel(x_ref, h_ref, wx_ref, wh_ref, b_ref, hid_ref, out_ref):
    dt = wx_ref.dtype
    acc = (jnp.dot(x_ref[...].astype(dt), wx_ref[...],
                   preferred_element_type=jnp.float32)
           + jnp.dot(h_ref[...].astype(dt), wh_ref[...],
                     preferred_element_type=jnp.float32)
           + b_ref[...])                                   # [B, 256] f32
    hid_ref[...] = jnp.maximum(acc[:, :HIDDEN_SIZE], 0.0)  # lane-dense 128-wide store
    out_ref[...] = _sigmoid(acc[:, HIDDEN_SIZE:])          # lane-dense 128-wide store


# ----------------------------------------------------------------------------
# Sequence kernel: grid = (batch_shards, time_chunks).  Weights resident in
# VMEM, hidden state carried across chunks in the resident hfin output block,
# input projection hoisted to one per-chunk matmul, per-step body = one dot.
# ----------------------------------------------------------------------------
def _rnn_seq_kernel(x_ref, h0_ref, wx_ref, wh_ref, b_ref,
                    out_ref, hfin_ref, xp_scr, *, t_chunk, b_shard):
    c = pl.program_id(1)

    @pl.when(c == 0)
    def _():
        hfin_ref[...] = h0_ref[...]          # per-shard initial hidden

    dt = wx_ref.dtype

    # Chunk-level input projection + bias: one [t_chunk*b_shard, 50] x [50, 256]
    # matmul off the serial dependence chain (actually fills MXU rows).
    x2d = x_ref[...].reshape(t_chunk * b_shard, INPUT_SIZE).astype(dt)
    xp_scr[...] = (jnp.dot(x2d, wx_ref[...], preferred_element_type=jnp.float32)
                   + b_ref[...])             # bias broadcast once per chunk

    def step(i, h):
        row = pl.multiple_of(i * b_shard, 8)
        acc = (xp_scr[pl.ds(row, b_shard), :]
               + jnp.dot(h.astype(dt), wh_ref[...],
                         preferred_element_type=jnp.float32))   # [b_shard, 256]
        new_h = jnp.maximum(acc[:, :HIDDEN_SIZE], 0.0)
        out_ref[i] = acc[:, HIDDEN_SIZE:]    # raw logits; sigmoid applied in wrapper
        return new_h

    unroll = 8 if (t_chunk % 8 == 0 and t_chunk > 8) else True
    hfin_ref[...] = lax.fori_loop(0, t_chunk, step, hfin_ref[...], unroll=unroll)


# ----------------------------------------------------------------------------
# Wrappers
# ----------------------------------------------------------------------------
def _round_up(n, m):
    return ((n + m - 1) // m) * m


def _pad_rows(x, rows):
    """Pad the (row / batch) axis, i.e. axis -2, up to `rows`."""
    if x.shape[-2] == rows:
        return x
    pad = [(0, 0)] * x.ndim
    pad[-2] = (0, rows - x.shape[-2])
    return jnp.pad(x, pad)


def _pick_chunk(t_steps, b_shard, target=128):
    """Largest divisor of t_steps <= target that keeps the xp scratch small."""
    cap = max(8, min(target, (4 << 20) // (b_shard * N_FUSED * 4)))
    t_chunk = min(t_steps, cap)
    while t_steps % t_chunk != 0:
        t_chunk -= 1
    return t_chunk


def _pick_shards(b_pad):
    """2 independent batch shards (one per v7x TensorCore) when alignment allows."""
    return 2 if (b_pad % 16 == 0 and b_pad >= 16) else 1


@jax.jit
def nlp_model_forward(input_tensor, hidden_tensor, prep):
    """One RNN-cell step.  Mirrors nlp_model.forward.

    input_tensor : [B, INPUT_SIZE]
    hidden_tensor: [B, HIDDEN_SIZE]
    returns (output [B, OUTPUT_SIZE], hidden [B, HIDDEN_SIZE])
    """
    wx, wh, b_fused = prep
    x = input_tensor.astype(jnp.float32)
    h = hidden_tensor.astype(jnp.float32)

    b = x.shape[0]
    b_pad = _round_up(max(b, 8), 8)           # f32 sublane alignment
    x = _pad_rows(x, b_pad)
    h = _pad_rows(h, b_pad)

    hid, out_p = pl.pallas_call(               # no grid: single invocation
        _rnn_cell_kernel,
        out_shape=(
            jax.ShapeDtypeStruct((b_pad, HIDDEN_SIZE), jnp.float32),
            jax.ShapeDtypeStruct((b_pad, OUT_PAD), jnp.float32),
        ),
    )(x, h, wx, wh, b_fused)

    return out_p[:b, :OUTPUT_SIZE], hid[:b]


@jax.jit
def nlp_model_sequence(x_seq, hidden0, prep):
    """Run the RNN cell over a whole sequence inside one pallas_call.

    x_seq  : [T, B, INPUT_SIZE]
    hidden0: [B, HIDDEN_SIZE]
    returns (outputs [T, B, OUTPUT_SIZE], final hidden [B, HIDDEN_SIZE])
    """
    wx, wh, b_fused = prep
    x_seq = x_seq.astype(jnp.float32)
    h0 = hidden0.astype(jnp.float32)

    t_steps, b, _ = x_seq.shape
    b_pad = _round_up(max(b, 8), 8)
    x_seq = _pad_rows(x_seq, b_pad)
    h0 = _pad_rows(h0, b_pad)

    n_shards = _pick_shards(b_pad)
    b_shard = b_pad // n_shards
    t_chunk = _pick_chunk(t_steps, b_shard)
    n_chunks = t_steps // t_chunk

    kernel = functools.partial(_rnn_seq_kernel, t_chunk=t_chunk, b_shard=b_shard)

    logits, h_final = pl.pallas_call(
        kernel,
        out_shape=(
            jax.ShapeDtypeStruct((t_steps, b_pad, OUT_PAD), jnp.float32),
            jax.ShapeDtypeStruct((b_pad, HIDDEN_SIZE), jnp.float32),
        ),
        grid=(n_shards, n_chunks),
        in_specs=[
            pl.BlockSpec((t_chunk, b_shard, INPUT_SIZE), lambda s, c: (c, s, 0)),  # x chunk
            pl.BlockSpec((b_shard, HIDDEN_SIZE), lambda s, c: (s, 0)),             # h0 (per shard)
            pl.BlockSpec((INPUT_SIZE, N_FUSED), lambda s, c: (0, 0)),              # Wx (resident)
            pl.BlockSpec((HIDDEN_SIZE, N_FUSED), lambda s, c: (0, 0)),             # Wh (resident)
            pl.BlockSpec((1, N_FUSED), lambda s, c: (0, 0)),                       # bias (resident)
        ],
        out_specs=(
            pl.BlockSpec((t_chunk, b_shard, OUT_PAD), lambda s, c: (c, s, 0)),     # raw logits
            pl.BlockSpec((b_shard, HIDDEN_SIZE), lambda s, c: (s, 0)),             # hidden carrier
        ),
        scratch_shapes=[pltpu.VMEM((t_chunk * b_shard, N_FUSED), jnp.float32)],    # xp
        compiler_params=pltpu.CompilerParams(
            dimension_semantics=("parallel", "arbitrary")),   # shards parallel, time serial
    )(x_seq, h0, wx, wh, b_fused)

    # Sigmoid only on the real (unpadded) output column, off the serial path.
    out_seq = jax.nn.sigmoid(logits[:, :b, :OUTPUT_SIZE])
    return out_seq, h_final[:b]


# ----------------------------------------------------------------------------
# Parameter init (torch semantics) and one-time fusion / transposition.
# ----------------------------------------------------------------------------
def xavier_uniform(key, shape):
    """Matches torch.nn.init.xavier_uniform_ for a 2-D [out, in] weight."""
    fan_out, fan_in = shape
    limit = jnp.sqrt(6.0 / (fan_in + fan_out))
    return jax.random.uniform(key, shape, jnp.float32, -limit, limit)


def init_params(key):
    d_comb = INPUT_SIZE + HIDDEN_SIZE
    k1, k2, k3, k4 = jax.random.split(key, 4)
    # nn.Linear weight layout: [out_features, in_features]
    w_i2h = xavier_uniform(k1, (HIDDEN_SIZE, d_comb))
    w_i2o = xavier_uniform(k2, (OUTPUT_SIZE, d_comb))
    # nn.Linear default bias init: U(-1/sqrt(fan_in), 1/sqrt(fan_in))
    bound = 1.0 / jnp.sqrt(jnp.float32(d_comb))
    b_i2h = jax.random.uniform(k3, (HIDDEN_SIZE,), jnp.float32, -bound, bound)
    b_i2o = jax.random.uniform(k4, (OUTPUT_SIZE,), jnp.float32, -bound, bound)
    return (w_i2h, b_i2h, w_i2o, b_i2o)


def prepare_params(params, compute_dtype=jnp.float32):
    """One-time: transpose, fuse i2h/i2o into one 256-wide weight, pad output,
    split at K=INPUT_SIZE so the kernel never needs a concatenated input.
    compute_dtype=jnp.bfloat16 stores the MXU weight operands in bf16
    (f32 accumulation is kept inside the kernels)."""
    w_i2h, b_i2h, w_i2o, b_i2o = params
    d_comb = w_i2h.shape[1]

    w_fused = jnp.zeros((d_comb, N_FUSED), jnp.float32)
    w_fused = w_fused.at[:, :HIDDEN_SIZE].set(w_i2h.T)
    w_fused = w_fused.at[:, HIDDEN_SIZE:HIDDEN_SIZE + OUTPUT_SIZE].set(w_i2o.T)

    wx = w_fused[:INPUT_SIZE].astype(compute_dtype)     # [INPUT_SIZE, 256]
    wh = w_fused[INPUT_SIZE:].astype(compute_dtype)     # [HIDDEN_SIZE, 256]

    b_fused = jnp.zeros((1, N_FUSED), jnp.float32)      # bias stays f32 (added post-acc)
    b_fused = b_fused.at[0, :HIDDEN_SIZE].set(b_i2h)
    b_fused = b_fused.at[0, HIDDEN_SIZE:HIDDEN_SIZE + OUTPUT_SIZE].set(b_i2o)

    return wx, wh, b_fused


if __name__ == "__main__":
    key = jax.random.PRNGKey(0)
    k_param, k_in, k_seq, k_seq2 = jax.random.split(key, 4)
    params = init_params(k_param)
    prep = prepare_params(params)                 # fp32 path (exact semantics)

    w_i2h, b_i2h, w_i2o, b_i2o = params

    def ref_scan(xs, h_init):
        h_ref = h_init
        outs = []
        for t in range(xs.shape[0]):
            comb_t = jnp.concatenate([xs[t], h_ref], axis=1)
            h_ref = jnp.maximum(comb_t @ w_i2h.T + b_i2h, 0.0)
            outs.append(jax.nn.sigmoid(comb_t @ w_i2o.T + b_i2o))
        return jnp.stack(outs), h_ref

    # ---- single-step cell (exact forward semantics) ----
    batch = 2
    x = jax.random.normal(k_in, (batch, INPUT_SIZE), jnp.float32)
    h0 = jnp.zeros((batch, HIDDEN_SIZE), jnp.float32)   # init_hidden() broadcast to batch
    output, hidden = nlp_model_forward(x, h0, prep)
    jax.block_until_ready((output, hidden))

    comb = jnp.concatenate([x, h0], axis=1)
    ref_hidden = jnp.maximum(comb @ w_i2h.T + b_i2h, 0.0)
    ref_output = jax.nn.sigmoid(comb @ w_i2o.T + b_i2o)
    assert output.shape == (batch, OUTPUT_SIZE)
    assert hidden.shape == (batch, HIDDEN_SIZE)
    assert jnp.allclose(output, ref_output, atol=1e-5)
    assert jnp.allclose(hidden, ref_hidden, atol=1e-5)

    # ---- sequence kernel, fp32: chunked grid + hoisted x-projection ----
    seq_len, batch_s = 16, 5
    x_seq = jax.random.normal(k_seq, (seq_len, batch_s, INPUT_SIZE), jnp.float32)
    h_init = jnp.zeros((batch_s, HIDDEN_SIZE), jnp.float32)
    out_seq, h_final = nlp_model_sequence(x_seq, h_init, prep)
    jax.block_until_ready((out_seq, h_final))

    ref_out_seq, ref_h = ref_scan(x_seq, h_init)
    assert out_seq.shape == (seq_len, batch_s, OUTPUT_SIZE)
    assert h_final.shape == (batch_s, HIDDEN_SIZE)
    assert jnp.allclose(out_seq, ref_out_seq, atol=1e-4)
    assert jnp.allclose(h_final, ref_h, atol=1e-4)

    # ---- sequence kernel, bf16 MXU inputs + 2 parallel batch shards ----
    seq_len2, batch2 = 16, 16
    x_seq2 = jax.random.normal(k_seq2, (seq_len2, batch2, INPUT_SIZE), jnp.float32)
    h_init2 = jnp.zeros((batch2, HIDDEN_SIZE), jnp.float32)
    prep_bf16 = prepare_params(params, compute_dtype=jnp.bfloat16)
    out2, hf2 = nlp_model_sequence(x_seq2, h_init2, prep_bf16)
    jax.block_until_ready((out2, hf2))

    ref_out2, ref_h2 = ref_scan(x_seq2, h_init2)
    # bf16 inputs with f32 accumulation: looser tolerance vs the fp32 reference.
    assert jnp.allclose(out2, ref_out2, atol=5e-2)
    assert jnp.allclose(hf2, ref_h2, atol=2e-1)

    print("KERNEL_OK")
</pallas_src>

<mosaic_0001>
module attributes {stable_mosaic.version = 11 : i64} {
  func.func @_rnn_cell_kernel(%arg0: memref<8x50xf32, #tpu.memory_space<vmem>>, %arg1: memref<8x128xf32, #tpu.memory_space<vmem>>, %arg2: memref<50x256xf32, #tpu.memory_space<vmem>>, %arg3: memref<128x256xf32, #tpu.memory_space<vmem>>, %arg4: memref<1x256xf32, #tpu.memory_space<vmem>>, %arg5: memref<8x128xf32, #tpu.memory_space<vmem>>, %arg6: memref<8x128xf32, #tpu.memory_space<vmem>>) attributes {dimension_semantics = [], scalar_prefetch = 0 : i64, scratch_operands = 0 : i64, tpu.core_type = #tpu.core_type<tc>} {
    %c0 = arith.constant 0 : index
    %c0_0 = arith.constant 0 : index
    %0 = vector.load %arg0[%c0, %c0_0] : memref<8x50xf32, #tpu.memory_space<vmem>>, vector<8x50xf32>
    %c0_1 = arith.constant 0 : index
    %c0_2 = arith.constant 0 : index
    %1 = vector.load %arg2[%c0_1, %c0_2] : memref<50x256xf32, #tpu.memory_space<vmem>>, vector<50x256xf32>
    %cst = arith.constant dense<0.000000e+00> : vector<8x256xf32>
    %2 = tpu.matmul %0, %1, %cst {dimension_numbers = #tpu.dot_dimension_numbers<[1], [0], [0], [1], [0, 0, 1, 1], [], []>} : vector<8x50xf32>, vector<50x256xf32>, vector<8x256xf32> -> vector<8x256xf32>
    %c0_3 = arith.constant 0 : index
    %c0_4 = arith.constant 0 : index
    %3 = vector.load %arg1[%c0_3, %c0_4] : memref<8x128xf32, #tpu.memory_space<vmem>>, vector<8x128xf32>
    %c0_5 = arith.constant 0 : index
    %c0_6 = arith.constant 0 : index
    %4 = vector.load %arg3[%c0_5, %c0_6] : memref<128x256xf32, #tpu.memory_space<vmem>>, vector<128x256xf32>
    %cst_7 = arith.constant dense<0.000000e+00> : vector<8x256xf32>
    %5 = tpu.matmul %3, %4, %cst_7 {dimension_numbers = #tpu.dot_dimension_numbers<[1], [0], [0], [1], [0, 0, 1, 1], [], []>} : vector<8x128xf32>, vector<128x256xf32>, vector<8x256xf32> -> vector<8x256xf32>
    %6 = arith.addf %2, %5 : vector<8x256xf32>
    %c0_8 = arith.constant 0 : index
    %c0_9 = arith.constant 0 : index
    %7 = vector.load %arg4[%c0_8, %c0_9] : memref<1x256xf32, #tpu.memory_space<vmem>>, vector<1x256xf32>
    %8 = vector.broadcast %7 : vector<1x256xf32> to vector<8x256xf32>
    %9 = arith.addf %6, %8 : vector<8x256xf32>
    %10 = vector.extract_strided_slice %9 {offsets = [0, 0], sizes = [8, 128], strides = [1, 1]} : vector<8x256xf32> to vector<8x128xf32>
    %cst_10 = arith.constant 0.000000e+00 : f32
    %11 = vector.broadcast %cst_10 : f32 to vector<8x128xf32>
    %12 = arith.maximumf %10, %11 : vector<8x128xf32>
    %c0_11 = arith.constant 0 : index
    %c0_12 = arith.constant 0 : index
    %13 = vector.load %arg5[%c0_11, %c0_12] : memref<8x128xf32, #tpu.memory_space<vmem>>, vector<8x128xf32>
    tpu.vector_store %arg5[%c0_11, %c0_12], %12 {strides = array<i32>} : memref<8x128xf32, #tpu.memory_space<vmem>>, vector<8x128xf32>,
    %14 = vector.extract_strided_slice %9 {offsets = [0, 128], sizes = [8, 128], strides = [1, 1]} : vector<8x256xf32> to vector<8x128xf32>
    %cst_13 = arith.constant 0.000000e+00 : f32
    %15 = vector.broadcast %cst_13 : f32 to vector<8x128xf32>
    %16 = arith.subf %15, %14 : vector<8x128xf32>
    %17 = math.exp %16 : vector<8x128xf32>
    %cst_14 = arith.constant 1.000000e+00 : f32
    %18 = vector.broadcast %cst_14 : f32 to vector<8x128xf32>
    %19 = arith.addf %18, %17 : vector<8x128xf32>
    %cst_15 = arith.constant 1.000000e+00 : f32
    %20 = vector.broadcast %cst_15 : f32 to vector<8x128xf32>
    %21 = arith.divf %20, %19 : vector<8x128xf32>
    %c0_16 = arith.constant 0 : index
    %c0_17 = arith.constant 0 : index
    %22 = vector.load %arg6[%c0_16, %c0_17] : memref<8x128xf32, #tpu.memory_space<vmem>>, vector<8x128xf32>
    tpu.vector_store %arg6[%c0_16, %c0_17], %21 {strides = array<i32>} : memref<8x128xf32, #tpu.memory_space<vmem>>, vector<8x128xf32>,
    return
  }
}

</mosaic_0001>

<llo_original>
// kernel: nlp_model_forward.1
$region0: #{nlp_model_forward.1}
  #allocation0 [shape = 'u32[]', space=smem, size = 0x4, offset = 0x4, fixed_abs, tag = 'smem constant byte address 0x4 - core index']
  #allocation1 [shape = 'u32[144,128]{1,0:T(1,128)}', space=vmem, size = 0x12000, scoped, tag = 'internal scratch']
  %s0 = inlined_call_operand.vmem [shape: f32[8,50], index: 0, kind: input, shape index: {}]
  %s1 = inlined_call_operand.vmem [shape: f32[8,128], index: 1, kind: input, shape index: {}]
  %s2 = inlined_call_operand.hbm [shape: f32[50,256], index: 2, kind: input, shape index: {}]
  %s3 = inlined_call_operand.hbm [shape: f32[128,256], index: 3, kind: input, shape index: {}]
  %s4 = inlined_call_operand.vmem [shape: f32[1,256], index: 4, kind: input, shape index: {}]
  %s5 = inlined_call_operand.vmem [shape: f32[8,128], index: 5, kind: output, shape index: {0}]
  %s6 = inlined_call_operand.vmem [shape: f32[8,128], index: 6, kind: output, shape index: {1}]
  %7 = xla_tuple %s5, %s6
  %s8 = sld [smem:[#allocation0]]
  $region46: #{nlp_model_forward.1} parent=0
    _
  %s10 = ssub.s32 1, %s8
  %s11 = scalar_select 0, %s10, %s8
  $region1: #{nlp_model_forward.1} parent=0
    #allocation2 [shape = 'u8[57344]{0}', space=vmem, size = 0xe000, scoped, tag = 'input window, operand 2, single buffered']
    #allocation3 [shape = 's32[1]{0}', space=sflag, size = 0x4, scoped, tag = 'scoped memory for nlp_model_forward.1']
    #allocation4 [shape = 'u8[131072]{0}', space=vmem, size = 0x20000, scoped, tag = 'input window, operand 3, single buffered']
    #allocation5 [shape = 's32[1]{0}', space=sflag, size = 0x4, scoped, tag = 'scoped memory for nlp_model_forward.1']
    %12 = vsyncpa [#allocation3], 0
    %13 = vsyncpa [#allocation5], 0
    // Predicated region
    $region2: #{nlp_model_forward.1} parent=1 // pred_check
      _
    $region3: #{nlp_model_forward.1} parent=1 // pred_check_branch
      %15 = sbr.rel (0) target = $region5
    $region4: #{nlp_model_forward.1} parent=1 // pred_region
      _
    $region5: #{nlp_model_forward.1} parent=1 // pred_fallthru
      _
    // Predicated region
    $region6: #{nlp_model_forward.1} parent=1 // pred_check
      _
    $region7: #{nlp_model_forward.1} parent=1 // pred_check_branch
      %17 = sbr.rel (0) target = $region9
    $region8: #{nlp_model_forward.1} parent=1 // pred_region
      _
    $region9: #{nlp_model_forward.1} parent=1 // pred_fallthru
      _
    // Predicated region
    $region10: #{nlp_model_forward.1} parent=1 // pred_check
      _
    $region11: #{nlp_model_forward.1} parent=1 // pred_check_branch
      %19 = sbr.rel (0) target = $region13
    $region12: #{nlp_model_forward.1} parent=1 // pred_region
      %s21 = ssub.s32 1792, 1792
      %22 = vsyncadd [#allocation3], %s21
      %s23 = sshll.u32 [#allocation2], 4
      %s24 = int_to_ptr.vmem [resolvable:$true] %s23
      %29 = dma.hbm_to_vmem [thread:$0]  %s2, 1792, %s24, [#allocation3], 256, 256, 16
    $region13: #{nlp_model_forward.1} parent=1 // pred_fallthru
      _
    // Predicated region
    $region14: #{nlp_model_forward.1} parent=1 // pred_check
      _
    $region15: #{nlp_model_forward.1} parent=1 // pred_check_branch
      %31 = sbr.rel (0) target = $region17
    $region16: #{nlp_model_forward.1} parent=1 // pred_region
      %s33 = ssub.s32 4096, 4096
      %34 = vsyncadd [#allocation5], %s33
      %s35 = sshll.u32 [#allocation4], 4
      %s36 = int_to_ptr.vmem [resolvable:$true] %s35
      %41 = dma.hbm_to_vmem [thread:$0]  %s3, 4096, %s36, [#allocation5], 256, 256, 16
    $region17: #{nlp_model_forward.1} parent=1 // pred_fallthru
      _
    // Predicated region
    $region18: #{nlp_model_forward.1} parent=1 // pred_check
      _
    $region19: #{nlp_model_forward.1} parent=1 // pred_check_branch
      %43 = sbr.rel (0) target = $region21
    $region20: #{nlp_model_forward.1} parent=1 // pred_region
      _
    $region21: #{nlp_model_forward.1} parent=1 // pred_fallthru
      _
    // Predicated region
    $region22: #{nlp_model_forward.1} parent=1 // pred_check
      _
    $region23: #{nlp_model_forward.1} parent=1 // pred_check_branch
      %45 = sbr.rel (0) target = $region25
    $region24: #{nlp_model_forward.1} parent=1 // pred_region
      %46 = dma.done [#allocation3], 1792
    $region25: #{nlp_model_forward.1} parent=1 // pred_fallthru
      _
    // Predicated region
    $region26: #{nlp_model_forward.1} parent=1 // pred_check
      _
    $region27: #{nlp_model_forward.1} parent=1 // pred_check_branch
      %48 = sbr.rel (0) target = $region29
    $region28: #{nlp_model_forward.1} parent=1 // pred_region
      %49 = dma.done [#allocation5], 4096
    $region29: #{nlp_model_forward.1} parent=1 // pred_fallthru
      _
    %v50 = vld [vmem:[%s0] sm:$0xff]
    %v51 = vld [vmem:[#allocation2] sm:$0xff]
    %v52 = vld [vmem:[#allocation2 + $0x8] sm:$0xff]
    %v53 = vld [vmem:[#allocation2 + $0x10] sm:$0xff]
    %v54 = vld [vmem:[#allocation2 + $0x18] sm:$0xff]
    %v55 = vld [vmem:[#allocation2 + $0x20] sm:$0xff]
    %v56 = vld [vmem:[#allocation2 + $0x28] sm:$0xff]
    %v57 = vld [vmem:[#allocation2 + $0x30] sm:$0xff]
    %v58 = vld [vmem:[#allocation2 + $0x38] sm:$0xff]
    %v59 = vld [vmem:[#allocation2 + $0x40] sm:$0xff]
    %v60 = vld [vmem:[#allocation2 + $0x48] sm:$0xff]
    %v61 = vld [vmem:[#allocation2 + $0x50] sm:$0xff]
    %v62 = vld [vmem:[#allocation2 + $0x58] sm:$0xff]
    %v63 = vld [vmem:[#allocation2 + $0x60] sm:$0x3]
    %v64 = vld [vmem:[#allocation2 + $0x68] sm:$0x3]
    %v65 = vld [vmem:[%s1] sm:$0xff]
    %v66 = vld [vmem:[#allocation4] sm:$0xff]
    %v67 = vld [vmem:[#allocation4 + $0x8] sm:$0xff]
    %v68 = vld [vmem:[#allocation4 + $0x10] sm:$0xff]
    %v69 = vld [vmem:[#allocation4 + $0x18] sm:$0xff]
    %v70 = vld [vmem:[#allocation4 + $0x20] sm:$0xff]
    %v71 = vld [vmem:[#allocation4 + $0x28] sm:$0xff]
    %v72 = vld [vmem:[#allocation4 + $0x30] sm:$0xff]
    %v73 = vld [vmem:[#allocation4 + $0x38] sm:$0xff]
    %v74 = vld [vmem:[#allocation4 + $0x40] sm:$0xff]
    %v75 = vld [vmem:[#allocation4 + $0x48] sm:$0xff]
    %v76 = vld [vmem:[#allocation4 + $0x50] sm:$0xff]
    %v77 = vld [vmem:[#allocation4 + $0x58] sm:$0xff]
    %v78 = vld [vmem:[#allocation4 + $0x60] sm:$0xff]
    %v79 = vld [vmem:[#allocation4 + $0x68] sm:$0xff]
    %v80 = vld [vmem:[#allocation4 + $0x70] sm:$0xff]
    %v81 = vld [vmem:[#allocation4 + $0x78] sm:$0xff]
    %v82 = vld [vmem:[#allocation4 + $0x80] sm:$0xff]
    %v83 = vld [vmem:[#allocation4 + $0x88] sm:$0xff]
    %v84 = vld [vmem:[#allocation4 + $0x90] sm:$0xff]
    %v85 = vld [vmem:[#allocation4 + $0x98] sm:$0xff]
    %v86 = vld [vmem:[#allocation4 + $0xa0] sm:$0xff]
    %v87 = vld [vmem:[#allocation4 + $0xa8] sm:$0xff]
    %v88 = vld [vmem:[#allocation4 + $0xb0] sm:$0xff]
    %v89 = vld [vmem:[#allocation4 + $0xb8] sm:$0xff]
    %v90 = vld [vmem:[#allocation4 + $0xc0] sm:$0xff]
    %v91 = vld [vmem:[#allocation4 + $0xc8] sm:$0xff]
    %v92 = vld [vmem:[#allocation4 + $0xd0] sm:$0xff]
    %v93 = vld [vmem:[#allocation4 + $0xd8] sm:$0xff]
    %v94 = vld [vmem:[#allocation4 + $0xe0] sm:$0xff]
    %v95 = vld [vmem:[#allocation4 + $0xe8] sm:$0xff]
    %v96 = vld [vmem:[#allocation4 + $0xf0] sm:$0xff]
    %v97 = vld [vmem:[#allocation4 + $0xf8] sm:$0xff]
    %98 = vmatprep.subr.mxu0 %v67
    %99 = vmatpush1.msra.mxu0 %v66
    %100 = vmatprep.subr.mxu0 %v69
    %101 = vmatpush1.msra.mxu0 %v68
    %102 = vmatprep.subr.mxu0 %v71
    %103 = vmatpush1.msra.mxu0 %v70
    %104 = vmatprep.subr.mxu0 %v73
    %105 = vmatpush1.msra.mxu0 %v72
    %106 = vmatprep.subr.mxu0 %v75
    %107 = vmatpush1.msra.mxu0 %v74
    %108 = vmatprep.subr.mxu0 %v77
    %109 = vmatpush1.msra.mxu0 %v76
    %110 = vmatprep.subr.mxu0 %v79
    %111 = vmatpush1.msra.mxu0 %v78
    %112 = vmatprep.subr.mxu0 %v81
    %113 = vmatpush1.msra.mxu0 %v80
    %114 = vmatprep.subr.mxu0 %v83
    %115 = vmatpush1.msra.mxu0 %v82
    %116 = vmatprep.subr.mxu0 %v85
    %117 = vmatpush1.msra.mxu0 %v84
    %118 = vmatprep.subr.mxu0 %v87
    %119 = vmatpush1.msra.mxu0 %v86
    %120 = vmatprep.subr.mxu0 %v89
    %121 = vmatpush1.msra.mxu0 %v88
    %122 = vmatprep.subr.mxu0 %v91
    %123 = vmatpush1.msra.mxu0 %v90
    %124 = vmatprep.subr.mxu0 %v93
    %125 = vmatpush1.msra.mxu0 %v92
    %126 = vmatprep.subr.mxu0 %v95
    %127 = vmatpush1.msra.mxu0 %v94
    %128 = vmatprep.subr.mxu0 %v97
    %129 = vmatpush1.msra.mxu0 %v96
    %130 = vmatprep.subr.mxu0 0.0
    %131 = vmatpush1.msra.mxu0 0.0
    %132 = vmatprep.subr.mxu0 0.0
    %133 = vmatpush1.msra.mxu0 0.0
    %134 = vmatprep.subr.mxu0 0.0
    %135 = vmatpush1.msra.mxu0 0.0
    %136 = vmatprep.subr.mxu0 0.0
    %137 = vmatpush1.msra.mxu0 0.0
    %138 = vmatprep.subr.mxu0 0.0
    %139 = vmatpush1.msra.mxu0 0.0
    %140 = vmatprep.subr.mxu0 0.0
    %141 = vmatpush1.msra.mxu0 0.0
    %142 = vmatprep.subr.mxu0 0.0
    %143 = vmatpush1.msra.mxu0 0.0
    %144 = vmatprep.subr.mxu0 0.0
    %145 = vmatpush1.msra.mxu0 0.0
    %146 = vmatprep.subr.mxu0 0.0
    %147 = vmatpush1.msra.mxu0 0.0
    %148 = vmatprep.subr.mxu0 0.0
    %149 = vmatpush1.msra.mxu0 0.0
    %150 = vmatprep.subr.mxu0 0.0
    %151 = vmatpush1.msra.mxu0 0.0
    %152 = vmatprep.subr.mxu0 0.0
    %153 = vmatpush1.msra.mxu0 0.0
    %154 = vmatprep.subr.mxu0 0.0
    %155 = vmatpush1.msra.mxu0 0.0
    %156 = vmatprep.subr.mxu0 0.0
    %157 = vmatpush1.msra.mxu0 0.0
    %158 = vmatprep.subr.mxu0 0.0
    %159 = vmatpush1.msra.mxu0 0.0
    %160 = vmatprep.subr.mxu0 0.0
    %161 = vmatpush1.msra.mxu0 0.0
    %162 = vmatprep.mubr.f32.mxu0 0.0
    %163 = vmatmul.mubr.f32.gmra.mrb[0].mxu0 %v65
    %v164 = vpop.f32.mrb[0].mxu0
    %v165 = vadd.f32 0.0, %v164
    %v166 = vpop.f32.mrb[0].mxu0
    %v167 = vadd.f32 0.0, %v166
    %168 = vdwg.mxu0
    %vm169 = vcmask 408576
    %v171 = vsel %vm169, %v50, 0
    %vm173 = vcmask 1041408
    %v175 = vsel %vm173, %v63, 0
    %v178 = vsel %vm173, %v64, 0
    %180 = vmatprep.subr.mxu0 %v52
    %181 = vmatpush1.msra.mxu0 %v51
    %182 = vmatprep.subr.mxu0 %v54
    %183 = vmatpush1.msra.mxu0 %v53
    %184 = vmatprep.subr.mxu0 %v56
    %185 = vmatpush1.msra.mxu0 %v55
    %186 = vmatprep.subr.mxu0 %v58
    %187 = vmatpush1.msra.mxu0 %v57
    %188 = vmatprep.subr.mxu0 %v60
    %189 = vmatpush1.msra.mxu0 %v59
    %190 = vmatprep.subr.mxu0 %v62
    %191 = vmatpush1.msra.mxu0 %v61
    %192 = vmatprep.subr.mxu0 %v178
    %193 = vmatpush1.msra.mxu0 %v175
    %194 = vmatprep.subr.mxu0 0.0
    %195 = vmatpush1.msra.mxu0 0.0
    %196 = vmatprep.subr.mxu0 0.0
    %197 = vmatpush1.msra.mxu0 0.0
    %198 = vmatprep.subr.mxu0 0.0
    %199 = vmatpush1.msra.mxu0 0.0
    %200 = vmatprep.subr.mxu0 0.0
    %201 = vmatpush1.msra.mxu0 0.0
    %202 = vmatprep.subr.mxu0 0.0
    %203 = vmatpush1.msra.mxu0 0.0
    %204 = vmatprep.subr.mxu0 0.0
    %205 = vmatpush1.msra.mxu0 0.0
    %206 = vmatprep.subr.mxu0 0.0
    %207 = vmatpush1.msra.mxu0 0.0
    %208 = vmatprep.subr.mxu0 0.0
    %209 = vmatpush1.msra.mxu0 0.0
    %210 = vmatprep.subr.mxu0 0.0
    %211 = vmatpush1.msra.mxu0 0.0
    %212 = vmatprep.subr.mxu0 0.0
    %213 = vmatpush1.msra.mxu0 0.0
    %214 = vmatprep.subr.mxu0 0.0
    %215 = vmatpush1.msra.mxu0 0.0
    %216 = vmatprep.subr.mxu0 0.0
    %217 = vmatpush1.msra.mxu0 0.0
    %218 = vmatprep.subr.mxu0 0.0
    %219 = vmatpush1.msra.mxu0 0.0
    %220 = vmatprep.subr.mxu0 0.0
    %221 = vmatpush1.msra.mxu0 0.0
    %222 = vmatprep.subr.mxu0 0.0
    %223 = vmatpush1.msra.mxu0 0.0
    %224 = vmatprep.subr.mxu0 0.0
    %225 = vmatpush1.msra.mxu0 0.0
    %226 = vmatprep.subr.mxu0 0.0
    %227 = vmatpush1.msra.mxu0 0.0
    %228 = vmatprep.subr.mxu0 0.0
    %229 = vmatpush1.msra.mxu0 0.0
    %230 = vmatprep.subr.mxu0 0.0
    %231 = vmatpush1.msra.mxu0 0.0
    %232 = vmatprep.subr.mxu0 0.0
    %233 = vmatpush1.msra.mxu0 0.0
    %234 = vmatprep.subr.mxu0 0.0
    %235 = vmatpush1.msra.mxu0 0.0
    %236 = vmatprep.subr.mxu0 0.0
    %237 = vmatpush1.msra.mxu0 0.0
    %238 = vmatprep.subr.mxu0 0.0
    %239 = vmatpush1.msra.mxu0 0.0
    %240 = vmatprep.subr.mxu0 0.0
    %241 = vmatpush1.msra.mxu0 0.0
    %242 = vmatprep.subr.mxu0 0.0
    %243 = vmatpush1.msra.mxu0 0.0
    %244 = vmatprep.mubr.f32.mxu0 0.0
    %245 = vmatmul.mubr.f32.gmra.mrb[0].mxu0 %v171
    %v246 = vpop.f32.mrb[0].mxu0
    %v247 = vadd.f32 %v165, %v246
    %v248 = vpop.f32.mrb[0].mxu0
    %v249 = vadd.f32 %v167, %v248
    %250 = vdwg.mxu0
    %v251 = vld [vmem:[%s4] sm:$0x3]
    %v253 = vlaneseq
    %v254 = vshrl.u32 %v253, 7
    %v255 = vsub.s32 0, %v254
    %v256 = vrot.slane %v251, %v255
    %v257 = vlaneseq
    %v258 = vshrl.u32 %v257, 7
    %v259 = vsub.s32 1, %v258
    %v260 = vrot.slane %v251, %v259
    %v263 = vadd.f32 %v247, %v256
    %v264 = vadd.f32 %v249, %v260
    %v265 = vmax.f32 %v263, 0.0
    %266 = vst [vmem:[%s5] sm:$0xff] %v265
    %v267 = vsub.f32 0.0, %v264
    %v268 = vmul.f32 %v267, 1.442695
    %v269 = vpow.pop %v268
    %v270 = vadd.f32 %v269, 1.0
    %v271 = vrcp.pop %v270
    %v272 = vmul.f32 1.0, %v271
    %273 = vst [vmem:[%s6] sm:$0xff] %v272
    // Predicated region
    $region30: #{nlp_model_forward.1} parent=1 // pred_check
      _
    $region31: #{nlp_model_forward.1} parent=1 // pred_check_branch
      %275 = sbr.rel (0) target = $region33
    $region32: #{nlp_model_forward.1} parent=1 // pred_region
      _
    $region33: #{nlp_model_forward.1} parent=1 // pred_fallthru
      _
    // Predicated region
    $region34: #{nlp_model_forward.1} parent=1 // pred_check
      _
    $region35: #{nlp_model_forward.1} parent=1 // pred_check_branch
      %277 = sbr.rel (0) target = $region37
    $region36: #{nlp_model_forward.1} parent=1 // pred_region
      _
    $region37: #{nlp_model_forward.1} parent=1 // pred_fallthru
      _
    // Predicated region
    $region38: #{nlp_model_forward.1} parent=1 // pred_check
      _
    $region39: #{nlp_model_forward.1} parent=1 // pred_check_branch
      %279 = sbr.rel (0) target = $region41
    $region40: #{nlp_model_forward.1} parent=1 // pred_region
      _
    $region41: #{nlp_model_forward.1} parent=1 // pred_fallthru
      _
    // Predicated region
    $region42: #{nlp_model_forward.1} parent=1 // pred_check
      _
    $region43: #{nlp_model_forward.1} parent=1 // pred_check_branch
      %281 = sbr.rel (0) target = $region45
    $region44: #{nlp_model_forward.1} parent=1 // pred_region
      _
    $region45: #{nlp_model_forward.1} parent=1 // pred_fallthru
      _
    %282 = vsyncpa [#allocation3], 1
    %283 = vsyncpa [#allocation5], 1

</llo_original>
